<compile_context>
chip_gen: v5e
topology: v5e:2x2
jax: 0.10.0
libtpu: 0.0.40
codegen_flags: <defaults>
</compile_context>

<pallas_src>
import jax
import jax.numpy as jnp
from jax.experimental import pallas as pl
from jax.experimental.pallas import tpu as pltpu


def _copy_kernel(x_ref, o_ref):
    # Identity copy of the current block (pure vld/vst filler; HBM-bound).
    o_ref[...] = x_ref[...]


def _sublane_multiple(dtype):
    # Sub-32-bit dtypes pack along sublanes; keep the second-to-last block dim
    # a multiple of the native sublane tile so accesses stay unmasked.
    itemsize = jnp.dtype(dtype).itemsize
    return {4: 8, 2: 16, 1: 32}.get(itemsize, 8)


def _hw_caps():
    """(block_bytes_cap, vmem_limit_bytes) tiered per TPU generation."""
    block_cap = 4 * 1024 * 1024      # conservative defaults: safe everywhere
    vmem_limit = 32 * 1024 * 1024
    try:
        vmem_phys = int(pltpu.get_tpu_info().vmem_capacity_bytes)
        if vmem_phys >= 96 * 1024 * 1024:
            # v5e / v6e: 128 MiB physical VMEM -> big blocks, generous limit.
            block_cap = 16 * 1024 * 1024
            vmem_limit = 96 * 1024 * 1024
        else:
            # v7x: 64 MiB physical VMEM. 4 x 8 MiB double-buffered <= 32 MiB.
            block_cap = 8 * 1024 * 1024
            vmem_limit = 40 * 1024 * 1024
    except Exception:
        pass  # unknown / query failed: keep conservative defaults
    return block_cap, vmem_limit


def _pick_lane_width(total):
    # Lane-dense layout: largest multiple of 128 (up to 1024) dividing numel.
    for cand in (1024, 512, 256, 128):
        if total % cand == 0:
            return cand
    return None  # odd size -> 1-D chunked fallback


def _pallas_copy_2d(x2d, block_bytes, vmem_limit):
    rows, lane = x2d.shape
    itemsize = jnp.dtype(x2d.dtype).itemsize
    sub = _sublane_multiple(x2d.dtype)
    max_rows = max(sub, (block_bytes // (lane * itemsize)) // sub * sub)
    row_tile = min(rows, max_rows)  # full extent (legal) or sublane-aligned
    grid = (pl.cdiv(rows, row_tile),)  # trailing partial block is masked
    return pl.pallas_call(
        _copy_kernel,
        out_shape=jax.ShapeDtypeStruct((rows, lane), x2d.dtype),
        grid=grid,
        in_specs=[pl.BlockSpec((row_tile, lane), lambda i: (i, 0))],
        out_specs=pl.BlockSpec((row_tile, lane), lambda i: (i, 0)),
        compiler_params=pltpu.CompilerParams(
            dimension_semantics=("parallel",),
            vmem_limit_bytes=vmem_limit,
        ),
        cost_estimate=pl.CostEstimate(
            flops=0, transcendentals=0, bytes_accessed=2 * x2d.nbytes),
    )(x2d)


def _pallas_copy_1d(x1d, block_bytes, vmem_limit):
    # Fallback for numel not a multiple of 128: flat copy in 128-multiple
    # chunks, only the final block is masked.
    (total,) = x1d.shape
    itemsize = jnp.dtype(x1d.dtype).itemsize
    chunk = max(128, (block_bytes // itemsize) // 128 * 128)
    if chunk >= total:
        chunk = total  # full extent is always a legal block shape
    grid = (pl.cdiv(total, chunk),)
    return pl.pallas_call(
        _copy_kernel,
        out_shape=jax.ShapeDtypeStruct((total,), x1d.dtype),
        grid=grid,
        in_specs=[pl.BlockSpec((chunk,), lambda i: (i,))],
        out_specs=pl.BlockSpec((chunk,), lambda i: (i,)),
        compiler_params=pltpu.CompilerParams(
            dimension_semantics=("parallel",),
            vmem_limit_bytes=vmem_limit,
        ),
        cost_estimate=pl.CostEstimate(
            flops=0, transcendentals=0, bytes_accessed=2 * x1d.nbytes),
    )(x1d)


def view_forward(x, outdim: int, *, force_pallas: bool = False,
                 min_copy_bytes: int = 1 << 20):
    """Equivalent of torch `x.view(-1, outdim)` for a contiguous input.

    Small inputs (or callers that don't need a materialized copy) take the
    metadata-only `jnp.reshape` path; larger ones stream through a Pallas
    copy at close to HBM roofline.
    """
    total = x.size
    assert total % outdim == 0, "input numel must be divisible by outdim"
    n_rows = total // outdim

    if not force_pallas and x.nbytes < min_copy_bytes:
        # A view is metadata only; skip the 2N-byte HBM round trip entirely.
        return jnp.reshape(x, (n_rows, outdim))

    block_bytes, vmem_limit = _hw_caps()
    lane = _pick_lane_width(total)
    if lane is not None:
        # Row-major flatten to the lane-dense copy layout (metadata only).
        x2d = jnp.reshape(x, (total // lane, lane))
        out = _pallas_copy_2d(x2d, block_bytes, vmem_limit)
    else:
        # TODO(synk): could HBM->HBM DMA (memory_space=pl.ANY) to skip VMEM,
        # but the BlockSpec pipeline already sits near the HBM roofline.
        out = _pallas_copy_1d(jnp.reshape(x, (total,)), block_bytes, vmem_limit)

    # Zero-cost metadata reshape to the torch .view(-1, outdim) shape.
    return jnp.reshape(out, (n_rows, outdim))


if __name__ == "__main__":
    key = jax.random.PRNGKey(0)
    # Input consistent with an NCHW conv feature map: (B=2, C=4, H=16, W=16)
    x = jax.random.normal(key, (2, 4, 16, 16), dtype=jnp.float32)
    outdim = 32  # 2*4*16*16 = 2048 elements -> output (64, 32)

    out = view_forward(x, outdim, force_pallas=True)  # exercise the Pallas copy
    out = jax.block_until_ready(out)

    # Correctness check against plain reshape (torch .view semantics).
    ref = jnp.reshape(x, (-1, outdim))
    assert out.shape == ref.shape, (out.shape, ref.shape)
    assert jnp.array_equal(out, ref), "Pallas view/copy mismatch"

    print("KERNEL_OK")
</pallas_src>

<mosaic_0001>
module attributes {stable_mosaic.version = 11 : i64} {
  func.func @_copy_kernel(%arg0: i32, %arg1: memref<2x1024xf32, #tpu.memory_space<vmem>>, %arg2: memref<2x1024xf32, #tpu.memory_space<vmem>>) attributes {dimension_semantics = [#tpu.dimension_semantics<parallel>], iteration_bounds = array<i64: 1>, scalar_prefetch = 0 : i64, scratch_operands = 0 : i64, tpu.core_type = #tpu.core_type<tc>, window_params = [{transform_indices = @transform_0, window_bounds = array<i64: 2, 1024>}, {transform_indices = @transform_1, window_bounds = array<i64: 2, 1024>}]} {
    %c0 = arith.constant 0 : index
    %c0_0 = arith.constant 0 : index
    %0 = vector.load %arg1[%c0, %c0_0] : memref<2x1024xf32, #tpu.memory_space<vmem>>, vector<2x1024xf32>
    %c0_1 = arith.constant 0 : index
    %c0_2 = arith.constant 0 : index
    %1 = vector.load %arg2[%c0_1, %c0_2] : memref<2x1024xf32, #tpu.memory_space<vmem>>, vector<2x1024xf32>
    tpu.vector_store %arg2[%c0_1, %c0_2], %0 {strides = array<i32>} : memref<2x1024xf32, #tpu.memory_space<vmem>>, vector<2x1024xf32>,
    return
  }
  func.func @transform_0(%arg0: i32) -> (i32, i32) {
    %c0_i32 = arith.constant 0 : i32
    %c0_i32_0 = arith.constant 0 : i32
    return %arg0, %c0_i32 : i32, i32
  }
  func.func @transform_1(%arg0: i32) -> (i32, i32) {
    %c0_i32 = arith.constant 0 : i32
    %c0_i32_0 = arith.constant 0 : i32
    return %arg0, %c0_i32 : i32, i32
  }
}

</mosaic_0001>

<llo_original>
// kernel: tpu_custom_call.1
$region0: #{tpu_custom_call.1}
  #allocation0 [shape = 'u32[]', space=smem, size = 0x4, offset = 0x4, fixed_abs, tag = 'smem constant byte address 0x4 - core index']
  #allocation1 [shape = 'u32[72,128]{1,0:T(1,128)}', space=vmem, size = 0x9000, scoped, tag = 'internal scratch']
  %s0 = inlined_call_operand.hbm [shape: f32[2,1024], index: 0, kind: input, shape index: {}]
  %s1 = inlined_call_operand.hbm [shape: f32[2,1024], index: 1, kind: output, shape index: {}]
  %s2 = sld [smem:[#allocation0]]
  $region18: #{tpu_custom_call.1} parent=0
    _
  %s4 = ssub.s32 1, %s2
  %s5 = scalar_select 0, %s4, %s2
  $region1: #{tpu_custom_call.1} parent=0
    #allocation2 [shape = 'u8[8192]{0}', space=vmem, size = 0x2000, scoped, tag = 'input window, operand 0, single buffered']
    #allocation3 [shape = 's32[1]{0}', space=sflag, size = 0x4, scoped, tag = 'scoped memory for tpu_custom_call.1']
    #allocation4 [shape = 's32[1]{0}', space=sflag, size = 0x4, scoped, tag = 'scoped memory for tpu_custom_call.1']
    #allocation5 [shape = 'u8[8192]{0}', space=vmem, size = 0x2000, scoped, tag = 'output window, operand 0, single buffered']
    %6 = vsyncpa [#allocation3], 0
    %7 = vsyncpa [#allocation4], 0
    // Predicated region
    $region2: #{tpu_custom_call.1} parent=1 // pred_check
      _
    $region3: #{tpu_custom_call.1} parent=1 // pred_check_branch
      %9 = sbr.rel (0) target = $region5
    $region4: #{tpu_custom_call.1} parent=1 // pred_region
      %11 = vsyncadd [#allocation3], 0
      %s13 = sshll.u32 %s0, 4
      %s14 = int_to_ptr.hbm [resolvable:$true] %s13
      %s15 = sshll.u32 [#allocation2], 4
      %s16 = int_to_ptr.vmem [resolvable:$true] %s15
      %18 = dma.hbm_to_vmem [thread:$0]  %s14, 256, %s16, [#allocation3]
    $region5: #{tpu_custom_call.1} parent=1 // pred_fallthru
      _
    // Predicated region
    $region6: #{tpu_custom_call.1} parent=1 // pred_check
      _
    $region7: #{tpu_custom_call.1} parent=1 // pred_check_branch
      %20 = sbr.rel (0) target = $region9
    $region8: #{tpu_custom_call.1} parent=1 // pred_region
      %22 = dma.done [#allocation3], 256
    $region9: #{tpu_custom_call.1} parent=1 // pred_fallthru
      _
    %v23 = vld [vmem:[#allocation2] sm:$0xff]
    %v24 = vld [vmem:[#allocation2 + $0x8] sm:$0xff]
    %25 = vst [vmem:[#allocation5] sm:$0xff] %v23
    %26 = vst [vmem:[#allocation5 + $0x8] sm:$0xff] %v24
    // Predicated region
    $region10: #{tpu_custom_call.1} parent=1 // pred_check
      _
    $region11: #{tpu_custom_call.1} parent=1 // pred_check_branch
      %28 = sbr.rel (0) target = $region13
    $region12: #{tpu_custom_call.1} parent=1 // pred_region
      %30 = vsyncadd [#allocation4], 0
      %s32 = sshll.u32 [#allocation5], 4
      %s33 = int_to_ptr.vmem [resolvable:$true] %s32
      %s34 = sshll.u32 %s1, 4
      %s35 = int_to_ptr.hbm [resolvable:$true] %s34
      %37 = dma.vmem_to_hbm [thread:$0]  %s33, 256, %s35, [#allocation4]
    $region13: #{tpu_custom_call.1} parent=1 // pred_fallthru
      _
    // Predicated region
    $region14: #{tpu_custom_call.1} parent=1 // pred_check
      _
    $region15: #{tpu_custom_call.1} parent=1 // pred_check_branch
      %39 = sbr.rel (0) target = $region17
    $region16: #{tpu_custom_call.1} parent=1 // pred_region
      %41 = dma.done [#allocation4], 256
    $region17: #{tpu_custom_call.1} parent=1 // pred_fallthru
      _
    %42 = vsyncpa [#allocation3], 1
    %43 = vsyncpa [#allocation4], 1

</llo_original>
